<compile_context>
chip_gen: v7x
topology: tpu7x:2x2x1
jax: 0.10.0
libtpu: 0.0.40
codegen_flags: <defaults>
</compile_context>

<pallas_src>
import math

import jax
import jax.numpy as jnp
from jax.experimental import pallas as pl
from jax.experimental.pallas import tpu as pltpu

LANE = 128


def _round_up(x, m):
    return ((x + m - 1) // m) * m


def _cdiv(a, b):
    return (a + b - 1) // b


def _pick_tile(dim, preferred, multiple=LANE):
    """Largest tile <= max(preferred, multiple) that divides `dim`.
    Assumes dim % multiple == 0 (we pad dims to LANE multiples first)."""
    preferred = max(multiple, (preferred // multiple) * multiple)
    if dim <= preferred:
        return dim
    t = preferred
    while dim % t != 0:
        t -= multiple
    return t


def _vmem_capacity_bytes():
    try:
        return int(pltpu.get_tpu_info().vmem_capacity_bytes)
    except Exception:
        return 64 * 1024 * 1024  # conservative (v7x per-core VMEM)


# --------------------------- kernels ---------------------------------------
def _wa_slice(wa_ref, k, tk):
    # weightA^T is either streamed per-K-tile (shape (tk, rp)) or fully
    # VMEM-resident (shape (Kp, rp)); slice the resident copy by K.
    if wa_ref.shape[0] == tk:
        return wa_ref[...]
    return wa_ref[pl.ds(pl.multiple_of(k * tk, tk), tk), :]


def _fused_single_k_kernel(x_ref, wa_ref, wb_ref, b_ref, o_ref):
    # Whole K in one step: no accumulator scratch, no zero-init, no extra add.
    low = jnp.dot(x_ref[...], wa_ref[...], preferred_element_type=jnp.float32)
    low = low.astype(wb_ref.dtype)
    y = jnp.dot(low, wb_ref[...], preferred_element_type=jnp.float32)
    o_ref[...] = (y + b_ref[...].astype(jnp.float32)).astype(o_ref.dtype)


def _fused_multi_k_kernel(x_ref, wa_ref, wb_ref, b_ref, o_ref, acc_ref):
    # grid = (batch_tiles, K_tiles); acc_ref is the f32 low-rank projection.
    k = pl.program_id(1)
    tk = x_ref.shape[1]

    @pl.when(k == 0)
    def _():
        acc_ref[...] = jnp.zeros_like(acc_ref)

    acc_ref[...] += jnp.dot(
        x_ref[...], _wa_slice(wa_ref, k, tk), preferred_element_type=jnp.float32
    )

    @pl.when(k == pl.num_programs(1) - 1)
    def _():
        low = acc_ref[...].astype(wb_ref.dtype)   # bf16 MXU operand if bf16 path
        y = jnp.dot(low, wb_ref[...], preferred_element_type=jnp.float32)
        o_ref[...] = (y + b_ref[...].astype(jnp.float32)).astype(o_ref.dtype)


def _proj_kernel(x_ref, wa_ref, low_ref):
    # Split path stage 1: low = x @ A^T, accumulated into the (resident) output.
    k = pl.program_id(1)
    tk = x_ref.shape[1]

    @pl.when(k == 0)
    def _():
        low_ref[...] = jnp.zeros_like(low_ref)

    low_ref[...] += jnp.dot(
        x_ref[...], _wa_slice(wa_ref, k, tk), preferred_element_type=jnp.float32
    )


def _expand_kernel(low_ref, wb_ref, b_ref, o_ref):
    # Split path stage 2: y = low @ B^T + bias, tiled over (batch, out).
    low = low_ref[...].astype(wb_ref.dtype)
    y = jnp.dot(low, wb_ref[...], preferred_element_type=jnp.float32)
    o_ref[...] = (y + b_ref[...].astype(jnp.float32)).astype(o_ref.dtype)


# --------------------------- wrapper ----------------------------------------
def linearlr_forward(
    x,                 # [batch, in_features]
    weightA,           # [rank, in_features]
    weightB,           # [out_features, rank]
    bias=None,         # [out_features] or None
    *,
    compute_dtype=None,        # e.g. jnp.bfloat16 to halve HBM traffic
    tile_b=None,
    tile_k=None,
    tile_n=None,
    vmem_budget_bytes=None,    # tile-sizing budget (also picks fused vs split)
    vmem_limit_bytes=None,
):
    batch, in_features = x.shape
    rank, in_a = weightA.shape
    out_features, rank_b = weightB.shape
    assert in_a == in_features and rank_b == rank
    assert rank <= min(in_features, out_features)

    out_dtype = x.dtype
    cdt = jnp.dtype(compute_dtype) if compute_dtype is not None else jnp.dtype(x.dtype)
    bx = cdt.itemsize
    bo = jnp.dtype(out_dtype).itemsize

    # ---- hardware-aware budgets (safe on v7x 64 MiB, bigger on v5e/v6e) ----
    cap = _vmem_capacity_bytes()
    if vmem_limit_bytes is None:
        vmem_limit_bytes = min(int(cap * 0.75), 112 * 1024 * 1024)
    if vmem_budget_bytes is None:
        vmem_budget_bytes = int(cap * 0.55)
    budget = vmem_budget_bytes
    big_vmem = cap >= 100 * 1024 * 1024
    if tile_b is None:
        tile_b = 1024 if big_vmem else 512
    if tile_k is None:
        tile_k = 2048 if big_vmem else 1024
    if tile_n is None:
        tile_n = 1024 if big_vmem else 512

    # ---- padded sizes: lane-dense, no full-dim K/N fallbacks ----
    rp = _round_up(rank, LANE)
    Kp = _round_up(in_features, LANE)
    Np = _round_up(out_features, LANE)

    # ---- batch tile: balanced padding, >= 2 parallel blocks (v7x megacore) ----
    mult = 16 if bx == 2 else 8
    nb_min = 2 if batch > mult else 1
    nb0 = max(_cdiv(batch, tile_b), nb_min)
    tb0 = _round_up(_cdiv(batch, nb0), mult)
    tk0 = _pick_tile(Kp, tile_k)

    # weightA^T fully VMEM-resident if small enough.
    wa_resident = 2 * Kp * rp * bx <= budget // 3

    def fused_bytes(tb_, tk_):
        wa = 2 * Kp * rp * bx if wa_resident else 2 * tk_ * rp * bx
        return (2 * tb_ * tk_ * bx + wa + 2 * rp * Np * bx + 2 * Np * 4
                + 2 * tb_ * Np * bo + tb_ * rp * 4)

    def proj_bytes(tb_, tk_):
        wa = 2 * Kp * rp * bx if wa_resident else 2 * tk_ * rp * bx
        return 2 * tb_ * tk_ * bx + wa + 2 * tb_ * rp * 4

    def expand_bytes(tb_, tn_):
        return 2 * tb_ * rp * 4 + 2 * rp * tn_ * bx + 2 * tn_ * 4 + 2 * tb_ * tn_ * bo

    # Try the fused single-call path first; shrink (tk, tb) to fit the budget.
    tb, tk = tb0, tk0
    while fused_bytes(tb, tk) > budget and (tk > LANE or tb > mult):
        if tk > LANE:
            tk = _pick_tile(Kp, tk - LANE)
        else:
            tb = max(mult, _round_up(tb // 2, mult))
    use_fused = fused_bytes(tb, tk) <= budget

    tn = _pick_tile(Np, tile_n)
    if not use_fused:
        # Wide output: two-call split path (projection + expansion).
        tb, tk = tb0, tk0
        while proj_bytes(tb, tk) > budget and (tk > LANE or tb > mult):
            if tk > LANE:
                tk = _pick_tile(Kp, tk - LANE)
            else:
                tb = max(mult, _round_up(tb // 2, mult))
        while expand_bytes(tb, tn) > budget and (tn > LANE or tb > mult):
            if tn > LANE:
                tn = _pick_tile(Np, tn - LANE)
            else:
                tb = max(mult, _round_up(tb // 2, mult))

    nb = _cdiv(batch, tb)
    batch_p = nb * tb
    nk = Kp // tk
    nn = Np // tn

    # ---- one-time wrapper-side casts / transposes / zero padding ----
    xc = x.astype(cdt)
    if batch_p != batch or Kp != in_features:
        xc = jnp.pad(xc, ((0, batch_p - batch), (0, Kp - in_features)))

    waT = weightA.astype(cdt).T                       # [in_features, rank]
    if Kp != in_features or rp != rank:
        waT = jnp.pad(waT, ((0, Kp - in_features), (0, rp - rank)))
    wbT = weightB.astype(cdt).T                       # [rank, out_features]
    if rp != rank or Np != out_features:
        wbT = jnp.pad(wbT, ((0, rp - rank), (0, Np - out_features)))

    if bias is None:
        bias2d = jnp.zeros((1, Np), jnp.float32)
    else:
        bias2d = bias.astype(jnp.float32).reshape(1, out_features)
        if Np != out_features:
            bias2d = jnp.pad(bias2d, ((0, 0), (0, Np - out_features)))

    wa_block = (Kp, rp) if wa_resident else (tk, rp)
    wa_index = (lambda i, k: (0, 0)) if wa_resident else (lambda i, k: (k, 0))

    if use_fused:
        kernel = _fused_single_k_kernel if nk == 1 else _fused_multi_k_kernel
        scratch = [] if nk == 1 else [pltpu.VMEM((tb, rp), jnp.float32)]
        y = pl.pallas_call(
            kernel,
            out_shape=jax.ShapeDtypeStruct((batch_p, Np), out_dtype),
            grid_spec=pltpu.PrefetchScalarGridSpec(
                num_scalar_prefetch=0,
                grid=(nb, nk),
                in_specs=[
                    pl.BlockSpec((tb, tk), lambda i, k: (i, k)),
                    pl.BlockSpec(wa_block, wa_index),
                    pl.BlockSpec((rp, Np), lambda i, k: (0, 0)),   # B^T resident
                    pl.BlockSpec((1, Np), lambda i, k: (0, 0)),    # bias resident
                ],
                out_specs=pl.BlockSpec((tb, Np), lambda i, k: (i, 0)),
                scratch_shapes=scratch,
            ),
            compiler_params=pltpu.CompilerParams(
                dimension_semantics=("parallel", "arbitrary"),
                vmem_limit_bytes=vmem_limit_bytes,
            ),
        )(xc, waT, wbT, bias2d)
    else:
        # Stage 1: low = x @ A^T  -> tiny [batch_p, rp] f32 intermediate.
        low = pl.pallas_call(
            _proj_kernel,
            out_shape=jax.ShapeDtypeStruct((batch_p, rp), jnp.float32),
            grid_spec=pltpu.PrefetchScalarGridSpec(
                num_scalar_prefetch=0,
                grid=(nb, nk),
                in_specs=[
                    pl.BlockSpec((tb, tk), lambda i, k: (i, k)),
                    pl.BlockSpec(wa_block, wa_index),
                ],
                out_specs=pl.BlockSpec((tb, rp), lambda i, k: (i, 0)),
            ),
            compiler_params=pltpu.CompilerParams(
                dimension_semantics=("parallel", "arbitrary"),
                vmem_limit_bytes=vmem_limit_bytes,
            ),
        )(xc, waT)
        # Stage 2: y = low @ B^T + bias, tiled over (batch, out).
        y = pl.pallas_call(
            _expand_kernel,
            out_shape=jax.ShapeDtypeStruct((batch_p, Np), out_dtype),
            grid_spec=pltpu.PrefetchScalarGridSpec(
                num_scalar_prefetch=0,
                grid=(nb, nn),
                in_specs=[
                    pl.BlockSpec((tb, rp), lambda i, j: (i, 0)),
                    pl.BlockSpec((rp, tn), lambda i, j: (0, j)),
                    pl.BlockSpec((1, tn), lambda i, j: (0, j)),
                ],
                out_specs=pl.BlockSpec((tb, tn), lambda i, j: (i, j)),
            ),
            compiler_params=pltpu.CompilerParams(
                dimension_semantics=("parallel", "parallel"),
                vmem_limit_bytes=vmem_limit_bytes,
            ),
        )(low, wbT, bias2d)

    if batch_p != batch or Np != out_features:
        y = y[:batch, :out_features]
    return y


# --------------------------- reference + tests -------------------------------
def _ref_forward(x, weightA, weightB, bias):
    weight_full = jnp.dot(weightB, weightA, precision="highest")  # [out, in]
    return jnp.dot(x, weight_full.T, precision="highest") + bias


if __name__ == "__main__":
    key = jax.random.PRNGKey(0)

    def make_params(key, batch, in_features, out_features, rank):
        kx, ka, kb, kbias = jax.random.split(key, 4)
        stdv_a = 1.0 / math.sqrt(in_features)
        stdv_b = 1.0 / math.sqrt(rank)
        weightA = jax.random.uniform(
            ka, (rank, in_features), jnp.float32, minval=-stdv_a, maxval=stdv_a)
        bias = jax.random.uniform(
            kbias, (out_features,), jnp.float32, minval=-stdv_a, maxval=stdv_a)
        weightB = jax.random.uniform(
            kb, (out_features, rank), jnp.float32, minval=-stdv_b, maxval=stdv_b)
        x = jax.random.normal(kx, (batch, in_features), jnp.float32)
        return x, weightA, weightB, bias

    k1, k2, k3, k4, k5 = jax.random.split(key, 5)

    # 1) small module-consistent shapes (fused path, single K step).
    x, wa, wb, b = make_params(k1, batch=16, in_features=32, out_features=16, rank=8)
    y = jax.block_until_ready(linearlr_forward(x, wa, wb, b))
    y_ref = _ref_forward(x, wa, wb, b)
    assert y.shape == (16, 16)
    assert jnp.allclose(y, y_ref, atol=1e-5, rtol=1e-5), (
        f"test1 max abs err = {jnp.max(jnp.abs(y - y_ref))}")

    # 2) rank close to full rank (still the low-rank path; dense fold removed).
    x, wa, wb, b = make_params(k2, batch=8, in_features=16, out_features=16, rank=12)
    y = jax.block_until_ready(linearlr_forward(x, wa, wb, b))
    y_ref = _ref_forward(x, wa, wb, b)
    assert jnp.allclose(y, y_ref, atol=1e-5, rtol=1e-5), (
        f"test2 max abs err = {jnp.max(jnp.abs(y - y_ref))}")

    # 3) multi-tile grid: ragged batch, multi-step K accumulation, resident A^T.
    x, wa, wb, b = make_params(k3, batch=250, in_features=384, out_features=256, rank=32)
    y = jax.block_until_ready(
        linearlr_forward(x, wa, wb, b, tile_b=128, tile_k=128, tile_n=128))
    y_ref = _ref_forward(x, wa, wb, b)
    assert y.shape == (250, 256)
    assert jnp.allclose(y, y_ref, atol=5e-4, rtol=1e-3), (
        f"test3 max abs err = {jnp.max(jnp.abs(y - y_ref))}")

    # 4) wide-output fallback: tiny VMEM budget forces the two-call split path.
    x, wa, wb, b = make_params(k4, batch=64, in_features=256, out_features=512, rank=16)
    y = jax.block_until_ready(
        linearlr_forward(x, wa, wb, b, vmem_budget_bytes=400 * 1024))
    y_ref = _ref_forward(x, wa, wb, b)
    assert y.shape == (64, 512)
    assert jnp.allclose(y, y_ref, atol=5e-4, rtol=1e-3), (
        f"test4 max abs err = {jnp.max(jnp.abs(y - y_ref))}")

    # 5) bf16 compute path (halved HBM traffic), looser tolerance.
    x, wa, wb, b = make_params(k5, batch=64, in_features=256, out_features=256, rank=32)
    y = jax.block_until_ready(
        linearlr_forward(x, wa, wb, b, compute_dtype=jnp.bfloat16))
    y_ref = _ref_forward(x, wa, wb, b)
    assert jnp.allclose(y, y_ref, atol=3e-2, rtol=3e-2), (
        f"test5 max abs err = {jnp.max(jnp.abs(y - y_ref))}")

    # 6) bias=None (module supports bias=False).
    y = jax.block_until_ready(linearlr_forward(x, wa, wb, None))
    y_ref = _ref_forward(x, wa, wb, jnp.zeros((256,), jnp.float32))
    assert jnp.allclose(y, y_ref, atol=5e-4, rtol=1e-3), (
        f"test6 max abs err = {jnp.max(jnp.abs(y - y_ref))}")

    print("KERNEL_OK")
</pallas_src>

<mosaic_0001>
module attributes {stable_mosaic.version = 11 : i64} {
  func.func @_fused_single_k_kernel(%arg0: i32, %arg1: i32, %arg2: memref<8x128xf32, #tpu.memory_space<vmem>>, %arg3: memref<128x128xf32, #tpu.memory_space<vmem>>, %arg4: memref<128x128xf32, #tpu.memory_space<vmem>>, %arg5: memref<1x128xf32, #tpu.memory_space<vmem>>, %arg6: memref<8x128xf32, #tpu.memory_space<vmem>>) attributes {dimension_semantics = [#tpu.dimension_semantics<parallel>, #tpu.dimension_semantics<arbitrary>], iteration_bounds = array<i64: 2, 1>, scalar_prefetch = 0 : i64, scratch_operands = 0 : i64, tpu.core_type = #tpu.core_type<tc>, window_params = [{transform_indices = @transform_0, window_bounds = array<i64: 8, 128>}, {pipeline_mode = #tpu.pipeline_mode<synchronous>, transform_indices = @transform_1, window_bounds = array<i64: 128, 128>}, {pipeline_mode = #tpu.pipeline_mode<synchronous>, transform_indices = @transform_2, window_bounds = array<i64: 128, 128>}, {pipeline_mode = #tpu.pipeline_mode<synchronous>, transform_indices = @transform_3, window_bounds = array<i64: 1, 128>}, {transform_indices = @transform_4, window_bounds = array<i64: 8, 128>}]} {
    %c0 = arith.constant 0 : index
    %c0_0 = arith.constant 0 : index
    %0 = vector.load %arg2[%c0, %c0_0] : memref<8x128xf32, #tpu.memory_space<vmem>>, vector<8x128xf32>
    %c0_1 = arith.constant 0 : index
    %c0_2 = arith.constant 0 : index
    %1 = vector.load %arg3[%c0_1, %c0_2] : memref<128x128xf32, #tpu.memory_space<vmem>>, vector<128x128xf32>
    %cst = arith.constant dense<0.000000e+00> : vector<8x128xf32>
    %2 = tpu.matmul %0, %1, %cst {dimension_numbers = #tpu.dot_dimension_numbers<[1], [0], [0], [1], [0, 0, 1, 1], [], []>} : vector<8x128xf32>, vector<128x128xf32>, vector<8x128xf32> -> vector<8x128xf32>
    %c0_3 = arith.constant 0 : index
    %c0_4 = arith.constant 0 : index
    %3 = vector.load %arg4[%c0_3, %c0_4] : memref<128x128xf32, #tpu.memory_space<vmem>>, vector<128x128xf32>
    %cst_5 = arith.constant dense<0.000000e+00> : vector<8x128xf32>
    %4 = tpu.matmul %2, %3, %cst_5 {dimension_numbers = #tpu.dot_dimension_numbers<[1], [0], [0], [1], [0, 0, 1, 1], [], []>} : vector<8x128xf32>, vector<128x128xf32>, vector<8x128xf32> -> vector<8x128xf32>
    %c0_6 = arith.constant 0 : index
    %c0_7 = arith.constant 0 : index
    %5 = vector.load %arg5[%c0_6, %c0_7] : memref<1x128xf32, #tpu.memory_space<vmem>>, vector<1x128xf32>
    %6 = vector.broadcast %5 : vector<1x128xf32> to vector<8x128xf32>
    %7 = arith.addf %4, %6 : vector<8x128xf32>
    %c0_8 = arith.constant 0 : index
    %c0_9 = arith.constant 0 : index
    %8 = vector.load %arg6[%c0_8, %c0_9] : memref<8x128xf32, #tpu.memory_space<vmem>>, vector<8x128xf32>
    tpu.vector_store %arg6[%c0_8, %c0_9], %7 {strides = array<i32>} : memref<8x128xf32, #tpu.memory_space<vmem>>, vector<8x128xf32>,
    return
  }
  func.func @transform_0(%arg0: i32, %arg1: i32) -> (i32, i32) {
    %c0_i32 = arith.constant 0 : i32
    return %arg0, %arg1 : i32, i32
  }
  func.func @transform_1(%arg0: i32, %arg1: i32) -> (i32, i32) {
    %c0_i32 = arith.constant 0 : i32
    %c0_i32_0 = arith.constant 0 : i32
    %c0_i32_1 = arith.constant 0 : i32
    return %c0_i32, %c0_i32_0 : i32, i32
  }
  func.func @transform_2(%arg0: i32, %arg1: i32) -> (i32, i32) {
    %c0_i32 = arith.constant 0 : i32
    %c0_i32_0 = arith.constant 0 : i32
    %c0_i32_1 = arith.constant 0 : i32
    return %c0_i32, %c0_i32_0 : i32, i32
  }
  func.func @transform_3(%arg0: i32, %arg1: i32) -> (i32, i32) {
    %c0_i32 = arith.constant 0 : i32
    %c0_i32_0 = arith.constant 0 : i32
    %c0_i32_1 = arith.constant 0 : i32
    return %c0_i32, %c0_i32_0 : i32, i32
  }
  func.func @transform_4(%arg0: i32, %arg1: i32) -> (i32, i32) {
    %c0_i32 = arith.constant 0 : i32
    %c0_i32_0 = arith.constant 0 : i32
    return %arg0, %c0_i32 : i32, i32
  }
}

</mosaic_0001>

<llo_original>
// kernel: tpu_custom_call.1
$region0: #{tpu_custom_call.1}
  #allocation0 [shape = 'u32[]', space=smem, size = 0x4, offset = 0x4, fixed_abs, tag = 'smem constant byte address 0x4 - core index']
  #allocation1 [shape = 'u32[144,128]{1,0:T(1,128)}', space=vmem, size = 0x12000, scoped, tag = 'internal scratch']
  %s0 = inlined_call_operand.hbm [shape: f32[16,128], index: 0, kind: input, shape index: {}]
  %s1 = inlined_call_operand.hbm [shape: f32[128,128], index: 1, kind: input, shape index: {}]
  %s2 = inlined_call_operand.hbm [shape: f32[128,128], index: 2, kind: input, shape index: {}]
  %s3 = inlined_call_operand.vmem [shape: f32[1,128], index: 3, kind: input, shape index: {}]
  %s4 = inlined_call_operand.hbm [shape: f32[16,128], index: 4, kind: output, shape index: {}]
  %s5 = sld [smem:[#allocation0]]
  $region61: #{tpu_custom_call.1} parent=0
    _
  %s7 = ssub.s32 1, %s5
  %s8 = scalar_select 0, %s7, %s5
  $region1: #{tpu_custom_call.1} parent=0
    #allocation2 [shape = 'u8[8192]{0}', space=vmem, size = 0x2000, scoped, tag = 'input window, operand 0']
    #allocation3 [shape = 's32[2]{0}', space=sflag, size = 0x8, scoped, tag = 'scoped memory for tpu_custom_call.1']
    #allocation4 [shape = 's32[2]{0}', space=sflag, size = 0x8, scoped, tag = 'scoped memory for tpu_custom_call.1']
    #allocation5 [shape = 'u8[65536]{0}', space=vmem, size = 0x10000, scoped, tag = 'input window, operand 1, single buffered']
    #allocation6 [shape = 's32[1]{0}', space=sflag, size = 0x4, scoped, tag = 'scoped memory for tpu_custom_call.1']
    #allocation7 [shape = 'u8[65536]{0}', space=vmem, size = 0x10000, scoped, tag = 'input window, operand 2, single buffered']
    #allocation8 [shape = 'u8[8192]{0}', space=vmem, size = 0x2000, scoped, tag = 'output window, operand 0']
    %9 = vsyncpa [#allocation3], 0
    %s10 = scalar_lea.sflag [#allocation3], 1
    %11 = vsyncpa %s10, 0
    %12 = vsyncpa [#allocation6], 0
    %13 = vsyncpa [#allocation4], 0
    %s14 = scalar_lea.sflag [#allocation4], 1
    %15 = vsyncpa %s14, 0
    loop: start=0, step=1, limit=4
    $region2: #{tpu_custom_call.1} parent=1 // loop_pre_header
      _
    $region3: #{tpu_custom_call.1} parent=1 // loop_header
      %s17 = sphi 0, %s21
      %p18 = scmp.ge.s32.totalorder %s17, 4
      %s24 = sphi 0, %s36
      %s25 = sphi 0, %s32
      %s26 = sphi 0, %s24
      %s27 = sphi 0, %s25
      %s28 = sphi 0, %s26
      %s29 = sphi 0, %s27
      %s41 = sphi 0, %s43
      %s44 = sphi 0, %s41
      %s45 = sphi 0, %s44
      %s61 = sphi 0, %s45
      %s65 = sphi 0, %s65
      %s67 = sphi 0, %s65
      %s68 = sphi 0, %s67
      %s82 = sphi 0, %s68
      %s86 = sphi 0, %s86
      %s88 = sphi 0, %s86
      %s89 = sphi 0, %s88
      %s103 = sphi 0, %s89
      %s107 = sphi 0, %s107
      %s109 = sphi 0, %s107
      %s110 = sphi 0, %s109
      %s124 = sphi 0, %s110
      %s130 = sphi 0, %s132
      %s133 = sphi 0, %s130
      %s134 = sphi 0, %s133
      %s150 = sphi 0, %s134
    $region4: #{tpu_custom_call.1} parent=1 // loop_header_branch
      %20 = sbr.rel (%p18) target = $region8
    $region5: #{tpu_custom_call.1} parent=1 // loop_body
      %s22 = ssub.s32 %s17, 1
      %s23 = ssub.s32 %s17, 2
      %s30 = sadd.s32 1, %s25
      %p31 = scmp.ge.s32.totalorder %s30, 1
      %s32 = scalar_select %p31, 0, %s30
      %s33 = sadd.s32 1, %s24
      %s34 = scalar_select %p31, %s33, %s24
      %p35 = scmp.ge.s32.totalorder %s34, 2
      %s36 = scalar_select %p35, 0, %s34
      %s37 = ssub.s32 %s24, %s36
      %s38 = ssub.s32 %s25, %s32
      %s39 = sor.u32 %s37, %s38
      %p40 = scmp.eq.s32.totalorder %s39, 0
      %s42 = sadd.s32 %s41, 1
      %s43 = scalar_select %p40, %s41, %s42
      %p46 = pneg %p40
      %p47 = scmp.eq.s32.totalorder %s17, 1
      %p48 = por %p46, %p47
      %p49 = scmp.ne.s32.totalorder %s41, %s44
      %p50 = scmp.eq.s32.totalorder %s17, 0
      %p51 = por %p49, %p50
      %p52 = scmp.ne.s32.totalorder %s41, %s44
      %p53 = scmp.eq.s32.totalorder %s22, 1
      %p54 = por %p52, %p53
      %p55 = scmp.ne.s32.totalorder %s44, %s45
      %p56 = scmp.eq.s32.totalorder %s22, 0
      %p57 = por %p55, %p56
      %p58 = scmp.ne.s32.totalorder %s44, %s45
      %p59 = scmp.eq.s32.totalorder %s23, 1
      %p60 = por %p58, %p59
      %p62 = scmp.ne.s32.totalorder %s45, %s61
      %p63 = scmp.eq.s32.totalorder %s23, 0
      %p64 = por %p62, %p63
      %s66 = sadd.s32 %s65, 1
      %p69 = scmp.eq.s32.totalorder %s17, 1
      %p70 = scmp.ne.s32.totalorder %s65, %s67
      %p71 = scmp.eq.s32.totalorder %s17, 0
      %p72 = por %p70, %p71
      %p73 = scmp.ne.s32.totalorder %s65, %s67
      %p74 = scmp.eq.s32.totalorder %s22, 1
      %p75 = por %p73, %p74
      %p76 = scmp.ne.s32.totalorder %s67, %s68
      %p77 = scmp.eq.s32.totalorder %s22, 0
      %p78 = por %p76, %p77
      %p79 = scmp.ne.s32.totalorder %s67, %s68
      %p80 = scmp.eq.s32.totalorder %s23, 1
      %p81 = por %p79, %p80
      %p83 = scmp.ne.s32.totalorder %s68, %s82
      %p84 = scmp.eq.s32.totalorder %s23, 0
      %p85 = por %p83, %p84
      %s87 = sadd.s32 %s86, 1
      %p90 = scmp.eq.s32.totalorder %s17, 1
      %p91 = scmp.ne.s32.totalorder %s86, %s88
      %p92 = scmp.eq.s32.totalorder %s17, 0
      %p93 = por %p91, %p92
      %p94 = scmp.ne.s32.totalorder %s86, %s88
      %p95 = scmp.eq.s32.totalorder %s22, 1
      %p96 = por %p94, %p95
      %p97 = scmp.ne.s32.totalorder %s88, %s89
      %p98 = scmp.eq.s32.totalorder %s22, 0
      %p99 = por %p97, %p98
      %p100 = scmp.ne.s32.totalorder %s88, %s89
      %p101 = scmp.eq.s32.totalorder %s23, 1
      %p102 = por %p100, %p101
      %p104 = scmp.ne.s32.totalorder %s89, %s103
      %p105 = scmp.eq.s32.totalorder %s23, 0
      %p106 = por %p104, %p105
      %s108 = sadd.s32 %s107, 1
      %p111 = scmp.eq.s32.totalorder %s17, 1
      %p112 = scmp.ne.s32.totalorder %s107, %s109
      %p113 = scmp.eq.s32.totalorder %s17, 0
      %p114 = por %p112, %p113
      %p115 = scmp.ne.s32.totalorder %s107, %s109
      %p116 = scmp.eq.s32.totalorder %s22, 1
      %p117 = por %p115, %p116
      %p118 = scmp.ne.s32.totalorder %s109, %s110
      %p119 = scmp.eq.s32.totalorder %s22, 0
      %p120 = por %p118, %p119
      %p121 = scmp.ne.s32.totalorder %s109, %s110
      %p122 = scmp.eq.s32.totalorder %s23, 1
      %p123 = por %p121, %p122
      %p125 = scmp.ne.s32.totalorder %s110, %s124
      %p126 = scmp.eq.s32.totalorder %s23, 0
      %p127 = por %p125, %p126
      %s128 = ssub.s32 %s24, %s36
      %p129 = scmp.eq.s32.totalorder %s128, 0
      %s131 = sadd.s32 %s130, 1
      %s132 = scalar_select %p129, %s130, %s131
      %p135 = pneg %p129
      %p136 = scmp.eq.s32.totalorder %s17, 1
      %p137 = por %p135, %p136
      %p138 = scmp.ne.s32.totalorder %s130, %s133
      %p139 = scmp.eq.s32.totalorder %s17, 0
      %p140 = por %p138, %p139
      %p141 = scmp.ne.s32.totalorder %s130, %s133
      %p142 = scmp.eq.s32.totalorder %s22, 1
      %p143 = por %p141, %p142
      %p144 = scmp.ne.s32.totalorder %s133, %s134
      %p145 = scmp.eq.s32.totalorder %s22, 0
      %p146 = por %p144, %p145
      %p147 = scmp.ne.s32.totalorder %s133, %s134
      %p148 = scmp.eq.s32.totalorder %s23, 1
      %p149 = por %p147, %p148
      %p151 = scmp.ne.s32.totalorder %s134, %s150
      %p152 = scmp.eq.s32.totalorder %s23, 0
      %p153 = por %p151, %p152
      %p154 = scmp.le.s32.totalorder 1, %s17
      %p155 = scmp.lt.s32.totalorder %s17, 3
      %p156 = pnand %p154, %p155
      %p157 = pneg %p156
      // Predicated region
      $region9: #{tpu_custom_call.1} parent=5 // pred_check
        _
      $region10: #{tpu_custom_call.1} parent=5 // pred_check_branch
        %159 = sbr.rel (%p156) target = $region12
      $region11: #{tpu_custom_call.1} parent=5 // pred_region
        %s160 = ssub.s32 %s17, 1
        // Predicated region
        $region13: #{tpu_custom_call.1} parent=11 // pred_check
          %p161 = pneg %p78
        $region14: #{tpu_custom_call.1} parent=11 // pred_check_branch
          %163 = sbr.rel (%p161) target = $region16
        $region15: #{tpu_custom_call.1} parent=11 // pred_region
          %s165 = ssub.s32 2048, 2048
          %166 = vsyncadd [#allocation6], %s165
          %s167 = sshll.u32 [#allocation5], 4
          %s168 = int_to_ptr.vmem [resolvable:$true] %s167
          %173 = dma.hbm_to_vmem [thread:$0]  %s1, 2048, %s168, [#allocation6], 128, 128, 8
        $region16: #{tpu_custom_call.1} parent=11 // pred_fallthru
          _
        // Predicated region
        $region17: #{tpu_custom_call.1} parent=11 // pred_check
          %p174 = pneg %p99
        $region18: #{tpu_custom_call.1} parent=11 // pred_check_branch
          %176 = sbr.rel (%p174) target = $region20
        $region19: #{tpu_custom_call.1} parent=11 // pred_region
          %s178 = ssub.s32 2048, 2048
          %179 = vsyncadd [#allocation6], %s178
          %s180 = sshll.u32 [#allocation7], 4
          %s181 = int_to_ptr.vmem [resolvable:$true] %s180
          %186 = dma.hbm_to_vmem [thread:$0]  %s2, 2048, %s181, [#allocation6], 128, 128, 8
        $region20: #{tpu_custom_call.1} parent=11 // pred_fallthru
          _
        // Predicated region
        $region21: #{tpu_custom_call.1} parent=11 // pred_check
          %p187 = pneg %p120
        $region22: #{tpu_custom_call.1} parent=11 // pred_check_branch
          %189 = sbr.rel (%p187) target = $region24
        $region23: #{tpu_custom_call.1} parent=11 // pred_region
          _
        $region24: #{tpu_custom_call.1} parent=11 // pred_fallthru
          _
      $region12: #{tpu_custom_call.1} parent=5 // pred_fallthru
        _
      %p190 = scmp.lt.s32.totalorder %s17, 2
      // Predicated region
      $region25: #{tpu_custom_call.1} parent=5 // pred_check
        %p191 = pneg %p190
      $region26: #{tpu_custom_call.1} parent=5 // pred_check_branch
        %193 = sbr.rel (%p191) target = $region28
      $region27: #{tpu_custom_call.1} parent=5 // pred_region
        // Predicated region
        $region29: #{tpu_custom_call.1} parent=27 // pred_check
          %p194 = pneg %p51
        $region30: #{tpu_custom_call.1} parent=27 // pred_check_branch
          %196 = sbr.rel (%p194) target = $region32
        $region31: #{tpu_custom_call.1} parent=27 // pred_region
          %s197 = sand.u32 %s41, 1
          %s198 = scalar_lea.sflag [#allocation3], %s197
          %s199 = sand.u32 %s41, 1
          %s200 = smul.addr %s199, 8
          %s201 = scalar_lea.vmem [#allocation2], %s200
          %s203 = ssub.s32 128, 128
          %204 = vsyncadd %s198, %s203
          %s205 = sadd.s32 %s25, %s24
          %s206 = smul.addr %s205, 128
          %s207 = scalar_lea.hbm %s0, %s206
          %s209 = sshll.u32 %s201, 4
          %s210 = int_to_ptr.vmem [resolvable:$true] %s209
          %212 = dma.hbm_to_vmem [thread:$0]  %s207, 128, %s210, %s198
        $region32: #{tpu_custom_call.1} parent=27 // pred_fallthru
          _
      $region28: #{tpu_custom_call.1} parent=5 // pred_fallthru
        _
      %p213 = scmp.le.s32.totalorder 1, %s17
      %p214 = scmp.lt.s32.totalorder %s17, 3
      %p215 = pnand %p213, %p214
      %p216 = pneg %p215
      // Predicated region
      $region33: #{tpu_custom_call.1} parent=5 // pred_check
        _
      $region34: #{tpu_custom_call.1} parent=5 // pred_check_branch
        %218 = sbr.rel (%p215) target = $region36
      $region35: #{tpu_custom_call.1} parent=5 // pred_region
        %s219 = ssub.s32 %s17, 1
        %s220 = sand.u32 %s44, 1
        %s221 = scalar_lea.sflag [#allocation3], %s220
        %s222 = sand.u32 %s44, 1
        %s223 = smul.addr %s222, 8
        %s224 = scalar_lea.vmem [#allocation2], %s223
        // Predicated region
        $region37: #{tpu_custom_call.1} parent=35 // pred_check
          %p225 = pneg %p57
        $region38: #{tpu_custom_call.1} parent=35 // pred_check_branch
          %227 = sbr.rel (%p225) target = $region40
        $region39: #{tpu_custom_call.1} parent=35 // pred_region
          %228 = dma.done %s221, 128
        $region40: #{tpu_custom_call.1} parent=35 // pred_fallthru
          _
        // Predicated region
        $region41: #{tpu_custom_call.1} parent=35 // pred_check
          %p229 = pneg %p78
        $region42: #{tpu_custom_call.1} parent=35 // pred_check_branch
          %231 = sbr.rel (%p229) target = $region44
        $region43: #{tpu_custom_call.1} parent=35 // pred_region
          %232 = dma.done [#allocation6], 2048
        $region44: #{tpu_custom_call.1} parent=35 // pred_fallthru
          _
        // Predicated region
        $region45: #{tpu_custom_call.1} parent=35 // pred_check
          %p233 = pneg %p99
        $region46: #{tpu_custom_call.1} parent=35 // pred_check_branch
          %235 = sbr.rel (%p233) target = $region48
        $region47: #{tpu_custom_call.1} parent=35 // pred_region
          %236 = dma.done [#allocation6], 2048
        $region48: #{tpu_custom_call.1} parent=35 // pred_fallthru
          _
        %s237 = sand.u32 %s44, 1
        %s238 = scalar_lea.sflag [#allocation3], %s237
        %s239 = sand.u32 %s44, 1
        %s240 = smul.addr %s239, 8
        %s241 = scalar_lea.vmem [#allocation2], %s240
        %p242 = pneg %p57
        %p243 = pneg %p54
        %p244 = pneg %p78
        %p245 = pneg %p75
        %p246 = pneg %p99
        %p247 = pneg %p96
        %p248 = pneg %p120
        %p249 = pneg %p117
        %p250 = pneg %p146
        %p251 = pneg %p143
        %s252 = sand.u32 %s133, 1
        %s253 = scalar_lea.sflag [#allocation4], %s252
        %s254 = sand.u32 %s133, 1
        %s255 = smul.addr %s254, 8
        %s256 = scalar_lea.vmem [#allocation8], %s255
        %v257 = vld [vmem:[%s224] sm:$0xff]
        %v258 = vld [vmem:[#allocation5] sm:$0xff]
        %v259 = vld [vmem:[#allocation5 + $0x8] sm:$0xff]
        %v260 = vld [vmem:[#allocation5 + $0x10] sm:$0xff]
        %v261 = vld [vmem:[#allocation5 + $0x18] sm:$0xff]
        %v262 = vld [vmem:[#allocation5 + $0x20] sm:$0xff]
        %v263 = vld [vmem:[#allocation5 + $0x28] sm:$0xff]
        %v264 = vld [vmem:[#allocation5 + $0x30] sm:$0xff]
        %v265 = vld [vmem:[#allocation5 + $0x38] sm:$0xff]
        %v266 = vld [vmem:[#allocation5 + $0x40] sm:$0xff]
        %v267 = vld [vmem:[#allocation5 + $0x48] sm:$0xff]
        %v268 = vld [vmem:[#allocation5 + $0x50] sm:$0xff]
        %v269 = vld [vmem:[#allocation5 + $0x58] sm:$0xff]
        %v270 = vld [vmem:[#allocation5 + $0x60] sm:$0xff]
        %v271 = vld [vmem:[#allocation5 + $0x68] sm:$0xff]
        %v272 = vld [vmem:[#allocation5 + $0x70] sm:$0xff]
        %v273 = vld [vmem:[#allocation5 + $0x78] sm:$0xff]
        %274 = vmatprep.subr.mxu0 0.0
        %275 = vmatpush1.msra.mxu0 %v258
        %276 = vmatprep.subr.mxu0 0.0
        %277 = vmatpush1.msra.mxu0 %v259
        %278 = vmatprep.subr.mxu0 0.0
        %279 = vmatpush1.msra.mxu0 %v260
        %280 = vmatprep.subr.mxu0 0.0
        %281 = vmatpush1.msra.mxu0 %v261
        %282 = vmatprep.subr.mxu0 0.0
        %283 = vmatpush1.msra.mxu0 %v262
        %284 = vmatprep.subr.mxu0 0.0
        %285 = vmatpush1.msra.mxu0 %v263
        %286 = vmatprep.subr.mxu0 0.0
        %287 = vmatpush1.msra.mxu0 %v264
        %288 = vmatprep.subr.mxu0 0.0
        %289 = vmatpush1.msra.mxu0 %v265
        %290 = vmatprep.subr.mxu0 0.0
        %291 = vmatpush1.msra.mxu0 %v266
        %292 = vmatprep.subr.mxu0 0.0
        %293 = vmatpush1.msra.mxu0 %v267
        %294 = vmatprep.subr.mxu0 0.0
        %295 = vmatpush1.msra.mxu0 %v268
        %296 = vmatprep.subr.mxu0 0.0
        %297 = vmatpush1.msra.mxu0 %v269
        %298 = vmatprep.subr.mxu0 0.0
        %299 = vmatpush1.msra.mxu0 %v270
        %300 = vmatprep.subr.mxu0 0.0
        %301 = vmatpush1.msra.mxu0 %v271
        %302 = vmatprep.subr.mxu0 0.0
        %303 = vmatpush1.msra.mxu0 %v272
        %304 = vmatprep.subr.mxu0 0.0
        %305 = vmatpush1.msra.mxu0 %v273
        %306 = vmatprep.subr.mxu0 0.0
        %307 = vmatpush1.msra.mxu0 0.0
        %308 = vmatprep.subr.mxu0 0.0
        %309 = vmatpush1.msra.mxu0 0.0
        %310 = vmatprep.subr.mxu0 0.0
        %311 = vmatpush1.msra.mxu0 0.0
        %312 = vmatprep.subr.mxu0 0.0
        %313 = vmatpush1.msra.mxu0 0.0
        %314 = vmatprep.subr.mxu0 0.0
        %315 = vmatpush1.msra.mxu0 0.0
        %316 = vmatprep.subr.mxu0 0.0
        %317 = vmatpush1.msra.mxu0 0.0
        %318 = vmatprep.subr.mxu0 0.0
        %319 = vmatpush1.msra.mxu0 0.0
        %320 = vmatprep.subr.mxu0 0.0
        %321 = vmatpush1.msra.mxu0 0.0
        %322 = vmatprep.subr.mxu0 0.0
        %323 = vmatpush1.msra.mxu0 0.0
        %324 = vmatprep.subr.mxu0 0.0
        %325 = vmatpush1.msra.mxu0 0.0
        %326 = vmatprep.subr.mxu0 0.0
        %327 = vmatpush1.msra.mxu0 0.0
        %328 = vmatprep.subr.mxu0 0.0
        %329 = vmatpush1.msra.mxu0 0.0
        %330 = vmatprep.subr.mxu0 0.0
        %331 = vmatpush1.msra.mxu0 0.0
        %332 = vmatprep.subr.mxu0 0.0
        %333 = vmatpush1.msra.mxu0 0.0
        %334 = vmatprep.subr.mxu0 0.0
        %335 = vmatpush1.msra.mxu0 0.0
        %336 = vmatprep.subr.mxu0 0.0
        %337 = vmatpush1.msra.mxu0 0.0
        %338 = vmatprep.mubr.f32.mxu0 0.0
        %339 = vmatmul.mubr.f32.gmra.mrb[0].mxu0 %v257
        %v340 = vpop.f32.mrb[0].mxu0
        %v341 = vadd.f32 0.0, %v340
        %v342 = vpop.f32.mrb[0].mxu0
        %343 = vdwg.mxu0
        %v344 = vld [vmem:[#allocation7] sm:$0xff]
        %v345 = vld [vmem:[#allocation7 + $0x8] sm:$0xff]
        %v346 = vld [vmem:[#allocation7 + $0x10] sm:$0xff]
        %v347 = vld [vmem:[#allocation7 + $0x18] sm:$0xff]
        %v348 = vld [vmem:[#allocation7 + $0x20] sm:$0xff]
        %v349 = vld [vmem:[#allocation7 + $0x28] sm:$0xff]
        %v350 = vld [vmem:[#allocation7 + $0x30] sm:$0xff]
        %v351 = vld [vmem:[#allocation7 + $0x38] sm:$0xff]
        %v352 = vld [vmem:[#allocation7 + $0x40] sm:$0xff]
        %v353 = vld [vmem:[#allocation7 + $0x48] sm:$0xff]
        %v354 = vld [vmem:[#allocation7 + $0x50] sm:$0xff]
        %v355 = vld [vmem:[#allocation7 + $0x58] sm:$0xff]
        %v356 = vld [vmem:[#allocation7 + $0x60] sm:$0xff]
        %v357 = vld [vmem:[#allocation7 + $0x68] sm:$0xff]
        %v358 = vld [vmem:[#allocation7 + $0x70] sm:$0xff]
        %v359 = vld [vmem:[#allocation7 + $0x78] sm:$0xff]
        %v360 = vld [vmem:[%s3] sm:$0x1]
        %v362 = vlaneseq
        %v363 = vshrl.u32 %v362, 7
        %v364 = vsub.s32 0, %v363
        %v365 = vrot.slane %v360, %v364
        %367 = vmatprep.subr.mxu0 0.0
        %368 = vmatpush1.msra.mxu0 %v344
        %369 = vmatprep.subr.mxu0 0.0
        %370 = vmatpush1.msra.mxu0 %v345
        %371 = vmatprep.subr.mxu0 0.0
        %372 = vmatpush1.msra.mxu0 %v346
        %373 = vmatprep.subr.mxu0 0.0
        %374 = vmatpush1.msra.mxu0 %v347
        %375 = vmatprep.subr.mxu0 0.0
        %376 = vmatpush1.msra.mxu0 %v348
        %377 = vmatprep.subr.mxu0 0.0
        %378 = vmatpush1.msra.mxu0 %v349
        %379 = vmatprep.subr.mxu0 0.0
        %380 = vmatpush1.msra.mxu0 %v350
        %381 = vmatprep.subr.mxu0 0.0
        %382 = vmatpush1.msra.mxu0 %v351
        %383 = vmatprep.subr.mxu0 0.0
        %384 = vmatpush1.msra.mxu0 %v352
        %385 = vmatprep.subr.mxu0 0.0
        %386 = vmatpush1.msra.mxu0 %v353
        %387 = vmatprep.subr.mxu0 0.0
        %388 = vmatpush1.msra.mxu0 %v354
        %389 = vmatprep.subr.mxu0 0.0
        %390 = vmatpush1.msra.mxu0 %v355
        %391 = vmatprep.subr.mxu0 0.0
        %392 = vmatpush1.msra.mxu0 %v356
        %393 = vmatprep.subr.mxu0 0.0
        %394 = vmatpush1.msra.mxu0 %v357
        %395 = vmatprep.subr.mxu0 0.0
        %396 = vmatpush1.msra.mxu0 %v358
        %397 = vmatprep.subr.mxu0 0.0
        %398 = vmatpush1.msra.mxu0 %v359
        %399 = vmatprep.subr.mxu0 0.0
        %400 = vmatpush1.msra.mxu0 0.0
        %401 = vmatprep.subr.mxu0 0.0
        %402 = vmatpush1.msra.mxu0 0.0
        %403 = vmatprep.subr.mxu0 0.0
        %404 = vmatpush1.msra.mxu0 0.0
        %405 = vmatprep.subr.mxu0 0.0
        %406 = vmatpush1.msra.mxu0 0.0
        %407 = vmatprep.subr.mxu0 0.0
        %408 = vmatpush1.msra.mxu0 0.0
        %409 = vmatprep.subr.mxu0 0.0
        %410 = vmatpush1.msra.mxu0 0.0
        %411 = vmatprep.subr.mxu0 0.0
        %412 = vmatpush1.msra.mxu0 0.0
        %413 = vmatprep.subr.mxu0 0.0
        %414 = vmatpush1.msra.mxu0 0.0
        %415 = vmatprep.subr.mxu0 0.0
        %416 = vmatpush1.msra.mxu0 0.0
        %417 = vmatprep.subr.mxu0 0.0
        %418 = vmatpush1.msra.mxu0 0.0
        %419 = vmatprep.subr.mxu0 0.0
        %420 = vmatpush1.msra.mxu0 0.0
        %421 = vmatprep.subr.mxu0 0.0
        %422 = vmatpush1.msra.mxu0 0.0
        %423 = vmatprep.subr.mxu0 0.0
        %424 = vmatpush1.msra.mxu0 0.0
        %425 = vmatprep.subr.mxu0 0.0
        %426 = vmatpush1.msra.mxu0 0.0
        %427 = vmatprep.subr.mxu0 0.0
        %428 = vmatpush1.msra.mxu0 0.0
        %429 = vmatprep.subr.mxu0 0.0
        %430 = vmatpush1.msra.mxu0 0.0
        %431 = vmatprep.mubr.f32.mxu0 0.0
        %432 = vmatmul.mubr.f32.gmra.mrb[0].mxu0 %v341
        %v433 = vpop.f32.mrb[0].mxu0
        %v434 = vadd.f32 %v365, %v433
        %v435 = vpop.f32.mrb[0].mxu0
        %436 = vdwg.mxu0
        %437 = vst [vmem:[%s256] sm:$0xff] %v434
        %s438 = sand.u32 %s133, 1
        %s439 = scalar_lea.sflag [#allocation4], %s438
        %s440 = sand.u32 %s133, 1
        %s441 = smul.addr %s440, 8
        %s442 = scalar_lea.vmem [#allocation8], %s441
        // Predicated region
        $region49: #{tpu_custom_call.1} parent=35 // pred_check
          %p443 = pneg %p143
        $region50: #{tpu_custom_call.1} parent=35 // pred_check_branch
          %445 = sbr.rel (%p443) target = $region52
        $region51: #{tpu_custom_call.1} parent=35 // pred_region
          %s447 = ssub.s32 128, 128
          %448 = vsyncadd %s439, %s447
          %s449 = smul.addr %s26, 128
          %s450 = scalar_lea.hbm %s4, %s449
          %s452 = sshll.u32 %s442, 4
          %s453 = int_to_ptr.vmem [resolvable:$true] %s452
          %455 = dma.vmem_to_hbm [thread:$0]  %s453, 128, %s450, %s439
        $region52: #{tpu_custom_call.1} parent=35 // pred_fallthru
          _
      $region36: #{tpu_custom_call.1} parent=5 // pred_fallthru
        _
      %p456 = scmp.le.s32.totalorder 2, %s17
      // Predicated region
      $region53: #{tpu_custom_call.1} parent=5 // pred_check
        %p457 = pneg %p456
      $region54: #{tpu_custom_call.1} parent=5 // pred_check_branch
        %459 = sbr.rel (%p457) target = $region56
      $region55: #{tpu_custom_call.1} parent=5 // pred_region
        %s460 = ssub.s32 %s17, 2
        // Predicated region
        $region57: #{tpu_custom_call.1} parent=55 // pred_check
          %p461 = pneg %p149
        $region58: #{tpu_custom_call.1} parent=55 // pred_check_branch
          %463 = sbr.rel (%p461) target = $region60
        $region59: #{tpu_custom_call.1} parent=55 // pred_region
          %s464 = sand.u32 %s134, 1
          %s465 = scalar_lea.sflag [#allocation4], %s464
          %s466 = sand.u32 %s134, 1
          %s467 = smul.addr %s466, 8
          %s468 = scalar_lea.vmem [#allocation8], %s467
          %469 = dma.done %s465, 128
        $region60: #{tpu_custom_call.1} parent=55 // pred_fallthru
          _
      $region56: #{tpu_custom_call.1} parent=5 // pred_fallthru
        _
    $region6: #{tpu_custom_call.1} parent=1 // loop_footer
      %s21 = sadd.s32 1, %s17
    $region7: #{tpu_custom_call.1} parent=1 // loop_footer_branch
      %16 = sbr.rel target = $region3
    $region8: #{tpu_custom_call.1} parent=1 // loop_exit
      _
    %470 = vsyncpa [#allocation3], 1
    %s471 = scalar_lea.sflag [#allocation3], 1
    %472 = vsyncpa %s471, 1
    %473 = vsyncpa [#allocation6], 1
    %474 = vsyncpa [#allocation4], 1
    %s475 = scalar_lea.sflag [#allocation4], 1
    %476 = vsyncpa %s475, 1

</llo_original>
